<compile_context>
chip_gen: v5e
topology: v5e:2x2
jax: 0.10.0
libtpu: 0.0.40
codegen_flags: <defaults>
</compile_context>

<pallas_src>
import jax
import jax.numpy as jnp
from jax.experimental import pallas as pl
from jax.experimental.pallas import tpu as pltpu

IN_DIM, H1, H2 = 512, 64, 32


def _round_up(x, m):
    return ((x + m - 1) // m) * m


def _cdiv(a, b):
    return -(-a // b)


def baseline_mlp_kernel(h_ref, w1_ref, b1_ref, w2_ref, b2_ref, w3_ref, b3_ref, o_ref):
    # h block: (TB, 512).  Cast to bf16 for the MXU (no-op if already bf16),
    # accumulate in f32.
    hb = h_ref[...].astype(jnp.bfloat16)

    # fc_1 + ReLU  (MXU, bf16 x bf16 -> f32)
    z1 = jnp.dot(hb, w1_ref[...], preferred_element_type=jnp.float32) + b1_ref[...]
    a1 = jnp.maximum(z1, 0.0)                                   # (TB, 64) f32

    # fc_2 + ReLU  (MXU)
    z2 = jnp.dot(a1.astype(jnp.bfloat16), w2_ref[...],
                 preferred_element_type=jnp.float32) + b2_ref[...]
    a2 = jnp.maximum(z2, 0.0)                                   # (TB, 32) f32

    # fc_3 (N=1, K=32): kept off the MXU.  One XLU transpose, VPU multiply, and a
    # sublane reduction -> naturally lane-dense (1, TB) row.
    a2t = jnp.transpose(a2)                                     # (32, TB)
    z3 = jnp.sum(a2t * w3_ref[...], axis=0, keepdims=True) + b3_ref[...]   # (1, TB)
    o_ref[...] = z3.astype(o_ref.dtype)


def baseline_network(h_t, params, *, tb_max=2048, h_buffers=None,
                     single_buffer_consts=False):
    """Forward pass of BaselineNetwork.

    h_t: (B, 512), float32 or bfloat16 (bf16 producers skip the in-kernel cast).
    params: w1 (512,64) bf16, b1 (1,64) f32, w2 (64,32) bf16, b2 (1,32) f32,
            w3 (32,1) f32, b3 (1,1) f32   (weights pre-transposed to (in, out)).
    h_buffers: optional pipeline depth for the h tile (review: sweep 2-4 on v7x).
    single_buffer_consts: optionally single-buffer the constant weight/bias operands.
    Returns (B, 1) float32.
    """
    B, D = h_t.shape
    assert D == IN_DIM
    w1, b1 = params["w1"], params["b1"]
    w2, b2 = params["w2"], params["b2"]
    w3, b3 = params["w3"], params["b3"]

    # ---- batch-tile selection ------------------------------------------------
    # Lane-dense output row => tile is a multiple of 128; cap for VMEM headroom.
    b128 = _round_up(max(B, 1), 128)
    tb = min(tb_max, b128)
    # Megacore: if the batch is big enough to split but would collapse to a single
    # grid step, halve the tile so dimension_semantics="parallel" can use both TCs.
    if b128 <= tb and b128 >= 256:
        tb = _round_up(_cdiv(b128, 2), 128)

    grid_b = _cdiv(B, tb)
    b_pad = grid_b * tb

    # No full-array pad of h_t.  Ragged tails are handled by Pallas partial blocks
    # (out-of-bounds rows of the tile are unspecified and sliced off by [:B] below).
    # Only when the entire batch is smaller than one tile do we pad — that copies
    # less than a single tile of data and keeps the one-block case trivially dense.
    if B < tb:
        h_t = jnp.pad(h_t, ((0, tb - B), (0, 0)))

    # ---- specs ---------------------------------------------------------------
    const_pm = pl.Buffered(1) if single_buffer_consts else None

    def const(shape):  # weights/biases: same block every step -> stay VMEM-resident
        if const_pm is None:
            return pl.BlockSpec(shape, lambda i: (0, 0))
        return pl.BlockSpec(shape, lambda i: (0, 0), pipeline_mode=const_pm)

    if h_buffers is None:
        h_spec = pl.BlockSpec((tb, IN_DIM), lambda i: (i, 0))
    else:
        h_spec = pl.BlockSpec((tb, IN_DIM), lambda i: (i, 0),
                              pipeline_mode=pl.Buffered(h_buffers))

    flops = 2 * b_pad * (IN_DIM * H1 + H1 * H2 + H2)
    bytes_accessed = (
        b_pad * IN_DIM * h_t.dtype.itemsize                 # h_t (dominant term)
        + w1.size * w1.dtype.itemsize + w2.size * w2.dtype.itemsize
        + w3.size * w3.dtype.itemsize
        + (b1.size + b2.size + b3.size) * 4                 # biases (f32)
        + b_pad * 4                                         # output
    )

    out = pl.pallas_call(
        baseline_mlp_kernel,
        out_shape=jax.ShapeDtypeStruct((1, b_pad), jnp.float32),
        grid=(grid_b,),
        in_specs=[
            h_spec,                                         # h tile, pipelined
            const(w1.shape), const(b1.shape),
            const(w2.shape), const(b2.shape),
            const(w3.shape), const(b3.shape),
        ],
        out_specs=pl.BlockSpec((1, tb), lambda i: (0, i)),  # lane-dense output row
        compiler_params=pltpu.CompilerParams(
            dimension_semantics=("parallel",),
            # 32 MiB: no-op on v6e/v7x defaults; lifts v5e's 16 MiB default so a
            # 2048-row tile (~13 MiB peak) never hits the scoped-VMEM ceiling.
            vmem_limit_bytes=32 * 1024 * 1024),
        cost_estimate=pl.CostEstimate(
            flops=flops, transcendentals=0, bytes_accessed=bytes_accessed),
    )(h_t, w1, b1, w2, b2, w3, b3)

    return out[0, :B].reshape(B, 1)


def init_params(key):
    """nn.Linear-style init; matmul weights stored (in, out); fc1/fc2 weights in bf16."""
    def linear(k, fan_in, fan_out, w_dtype):
        kw, kb = jax.random.split(k)
        bound = 1.0 / jnp.sqrt(fan_in)
        w = jax.random.uniform(kw, (fan_in, fan_out), jnp.float32, -bound, bound)
        b = jax.random.uniform(kb, (1, fan_out), jnp.float32, -bound, bound)
        return w.astype(w_dtype), b

    k1, k2, k3 = jax.random.split(key, 3)
    w1, b1 = linear(k1, IN_DIM, H1, jnp.bfloat16)
    w2, b2 = linear(k2, H1, H2, jnp.bfloat16)
    w3, b3 = linear(k3, H2, 1, jnp.float32)
    return {"w1": w1, "b1": b1, "w2": w2, "b2": b2, "w3": w3, "b3": b3}


if __name__ == "__main__":
    key = jax.random.PRNGKey(0)
    k_param, k_in = jax.random.split(key)

    params = init_params(k_param)
    B = 8
    h_t = jax.random.normal(k_in, (B, IN_DIM), dtype=jnp.float32)

    out = jax.block_until_ready(baseline_network(h_t, params))
    assert out.shape == (B, 1)

    # Pure-JAX reference mirroring the kernel math (bf16 MXU operands, f32 accumulation).
    # TODO(synk): h_t.detach() in the PyTorch module is autograd-only; no-op in a
    # forward-only kernel.
    a1 = jnp.maximum(
        jnp.dot(h_t.astype(jnp.bfloat16), params["w1"],
                preferred_element_type=jnp.float32) + params["b1"], 0.0)
    a2 = jnp.maximum(
        jnp.dot(a1.astype(jnp.bfloat16), params["w2"],
                preferred_element_type=jnp.float32) + params["b2"], 0.0)
    ref = jnp.dot(a2, params["w3"], preferred_element_type=jnp.float32) + params["b3"]

    assert jnp.allclose(out, ref, atol=2e-3, rtol=2e-3), float(jnp.max(jnp.abs(out - ref)))

    print("KERNEL_OK")
</pallas_src>

<mosaic_0001>
module attributes {stable_mosaic.version = 11 : i64} {
  func.func @baseline_mlp_kernel(%arg0: i32, %arg1: memref<128x512xf32, #tpu.memory_space<vmem>>, %arg2: memref<512x64xbf16, #tpu.memory_space<vmem>>, %arg3: memref<1x64xf32, #tpu.memory_space<vmem>>, %arg4: memref<64x32xbf16, #tpu.memory_space<vmem>>, %arg5: memref<1x32xf32, #tpu.memory_space<vmem>>, %arg6: memref<32x1xf32, #tpu.memory_space<vmem>>, %arg7: memref<1x1xf32, #tpu.memory_space<vmem>>, %arg8: memref<1x128xf32, #tpu.memory_space<vmem>>) attributes {dimension_semantics = [#tpu.dimension_semantics<parallel>], iteration_bounds = array<i64: 1>, scalar_prefetch = 0 : i64, scratch_operands = 0 : i64, tpu.core_type = #tpu.core_type<tc>, window_params = [{transform_indices = @transform_0, window_bounds = array<i64: 128, 512>}, {pipeline_mode = #tpu.pipeline_mode<synchronous>, transform_indices = @transform_1, window_bounds = array<i64: 512, 64>}, {pipeline_mode = #tpu.pipeline_mode<synchronous>, transform_indices = @transform_2, window_bounds = array<i64: 1, 64>}, {pipeline_mode = #tpu.pipeline_mode<synchronous>, transform_indices = @transform_3, window_bounds = array<i64: 64, 32>}, {pipeline_mode = #tpu.pipeline_mode<synchronous>, transform_indices = @transform_4, window_bounds = array<i64: 1, 32>}, {pipeline_mode = #tpu.pipeline_mode<synchronous>, transform_indices = @transform_5, window_bounds = array<i64: 32, 1>}, {pipeline_mode = #tpu.pipeline_mode<synchronous>, transform_indices = @transform_6, window_bounds = array<i64: 1, 1>}, {transform_indices = @transform_7, window_bounds = array<i64: 1, 128>}]} {
    %c0 = arith.constant 0 : index
    %c0_0 = arith.constant 0 : index
    %0 = vector.load %arg1[%c0, %c0_0] : memref<128x512xf32, #tpu.memory_space<vmem>>, vector<128x512xf32>
    %1 = arith.truncf %0 : vector<128x512xf32> to vector<128x512xbf16>
    %c0_1 = arith.constant 0 : index
    %c0_2 = arith.constant 0 : index
    %2 = vector.load %arg2[%c0_1, %c0_2] : memref<512x64xbf16, #tpu.memory_space<vmem>>, vector<512x64xbf16>
    %cst = arith.constant dense<0.000000e+00> : vector<128x64xf32>
    %3 = tpu.matmul %1, %2, %cst {dimension_numbers = #tpu.dot_dimension_numbers<[1], [0], [0], [1], [0, 0, 1, 1], [], []>} : vector<128x512xbf16>, vector<512x64xbf16>, vector<128x64xf32> -> vector<128x64xf32>
    %c0_3 = arith.constant 0 : index
    %c0_4 = arith.constant 0 : index
    %4 = vector.load %arg3[%c0_3, %c0_4] : memref<1x64xf32, #tpu.memory_space<vmem>>, vector<1x64xf32>
    %5 = vector.broadcast %4 : vector<1x64xf32> to vector<128x64xf32>
    %6 = arith.addf %3, %5 : vector<128x64xf32>
    %cst_5 = arith.constant 0.000000e+00 : f32
    %7 = vector.broadcast %cst_5 : f32 to vector<128x64xf32>
    %8 = arith.maximumf %6, %7 : vector<128x64xf32>
    %9 = arith.truncf %8 : vector<128x64xf32> to vector<128x64xbf16>
    %c0_6 = arith.constant 0 : index
    %c0_7 = arith.constant 0 : index
    %10 = vector.load %arg4[%c0_6, %c0_7] : memref<64x32xbf16, #tpu.memory_space<vmem>>, vector<64x32xbf16>
    %cst_8 = arith.constant dense<0.000000e+00> : vector<128x32xf32>
    %11 = tpu.matmul %9, %10, %cst_8 {dimension_numbers = #tpu.dot_dimension_numbers<[1], [0], [0], [1], [0, 0, 1, 1], [], []>} : vector<128x64xbf16>, vector<64x32xbf16>, vector<128x32xf32> -> vector<128x32xf32>
    %c0_9 = arith.constant 0 : index
    %c0_10 = arith.constant 0 : index
    %12 = vector.load %arg5[%c0_9, %c0_10] : memref<1x32xf32, #tpu.memory_space<vmem>>, vector<1x32xf32>
    %13 = vector.broadcast %12 : vector<1x32xf32> to vector<128x32xf32>
    %14 = arith.addf %11, %13 : vector<128x32xf32>
    %cst_11 = arith.constant 0.000000e+00 : f32
    %15 = vector.broadcast %cst_11 : f32 to vector<128x32xf32>
    %16 = arith.maximumf %14, %15 : vector<128x32xf32>
    %17 = tpu.transpose %16, [1, 0] : vector<128x32xf32> -> vector<32x128xf32>
    %c0_12 = arith.constant 0 : index
    %c0_13 = arith.constant 0 : index
    %18 = vector.load %arg6[%c0_12, %c0_13] : memref<32x1xf32, #tpu.memory_space<vmem>>, vector<32x1xf32>
    %19 = vector.broadcast %18 : vector<32x1xf32> to vector<32x128xf32>
    %20 = arith.mulf %17, %19 : vector<32x128xf32>
    %cst_14 = arith.constant dense<0.000000e+00> : vector<128xf32>
    %21 = vector.multi_reduction <add>, %20, %cst_14 [0] : vector<32x128xf32> to vector<128xf32>
    %22 = vector.shape_cast %21 : vector<128xf32> to vector<1x128xf32>
    %c0_15 = arith.constant 0 : index
    %c0_16 = arith.constant 0 : index
    %23 = vector.load %arg7[%c0_15, %c0_16] : memref<1x1xf32, #tpu.memory_space<vmem>>, vector<1x1xf32>
    %24 = vector.broadcast %23 : vector<1x1xf32> to vector<1x128xf32>
    %25 = arith.addf %22, %24 : vector<1x128xf32>
    %c0_17 = arith.constant 0 : index
    %c0_18 = arith.constant 0 : index
    %26 = vector.load %arg8[%c0_17, %c0_18] : memref<1x128xf32, #tpu.memory_space<vmem>>, vector<1x128xf32>
    tpu.vector_store %arg8[%c0_17, %c0_18], %25 {strides = array<i32>} : memref<1x128xf32, #tpu.memory_space<vmem>>, vector<1x128xf32>,
    return
  }
  func.func @transform_0(%arg0: i32) -> (i32, i32) {
    %c0_i32 = arith.constant 0 : i32
    %c0_i32_0 = arith.constant 0 : i32
    return %arg0, %c0_i32 : i32, i32
  }
  func.func @transform_1(%arg0: i32) -> (i32, i32) {
    %c0_i32 = arith.constant 0 : i32
    %c0_i32_0 = arith.constant 0 : i32
    %c0_i32_1 = arith.constant 0 : i32
    return %c0_i32, %c0_i32_0 : i32, i32
  }
  func.func @transform_2(%arg0: i32) -> (i32, i32) {
    %c0_i32 = arith.constant 0 : i32
    %c0_i32_0 = arith.constant 0 : i32
    %c0_i32_1 = arith.constant 0 : i32
    return %c0_i32, %c0_i32_0 : i32, i32
  }
  func.func @transform_3(%arg0: i32) -> (i32, i32) {
    %c0_i32 = arith.constant 0 : i32
    %c0_i32_0 = arith.constant 0 : i32
    %c0_i32_1 = arith.constant 0 : i32
    return %c0_i32, %c0_i32_0 : i32, i32
  }
  func.func @transform_4(%arg0: i32) -> (i32, i32) {
    %c0_i32 = arith.constant 0 : i32
    %c0_i32_0 = arith.constant 0 : i32
    %c0_i32_1 = arith.constant 0 : i32
    return %c0_i32, %c0_i32_0 : i32, i32
  }
  func.func @transform_5(%arg0: i32) -> (i32, i32) {
    %c0_i32 = arith.constant 0 : i32
    %c0_i32_0 = arith.constant 0 : i32
    %c0_i32_1 = arith.constant 0 : i32
    return %c0_i32, %c0_i32_0 : i32, i32
  }
  func.func @transform_6(%arg0: i32) -> (i32, i32) {
    %c0_i32 = arith.constant 0 : i32
    %c0_i32_0 = arith.constant 0 : i32
    %c0_i32_1 = arith.constant 0 : i32
    return %c0_i32, %c0_i32_0 : i32, i32
  }
  func.func @transform_7(%arg0: i32) -> (i32, i32) {
    %c0_i32 = arith.constant 0 : i32
    %c0_i32_0 = arith.constant 0 : i32
    return %c0_i32, %arg0 : i32, i32
  }
}

</mosaic_0001>

<llo_original>
// kernel: tpu_custom_call.1
$region0: #{tpu_custom_call.1}
  #allocation0 [shape = 'u32[]', space=smem, size = 0x4, offset = 0x4, fixed_abs, tag = 'smem constant byte address 0x4 - core index']
  #allocation1 [shape = 'u32[72,128]{1,0:T(1,128)}', space=vmem, size = 0x9000, scoped, tag = 'internal scratch']
  #allocation2 [shape = 'f32[1,1]{1,0:T(1,128)S(1)}', space=vmem, size = 0x200, scoped, tag = 'scoped memory for tpu_custom_call.1']
  %s0 = inlined_call_operand.hbm [shape: f32[128,512], index: 0, kind: input, shape index: {}]
  %s1 = inlined_call_operand.vmem [shape: bf16[512,64], index: 1, kind: input, shape index: {}]
  %s2 = inlined_call_operand.vmem [shape: f32[1,64], index: 2, kind: input, shape index: {}]
  %s3 = inlined_call_operand.vmem [shape: bf16[64,32], index: 3, kind: input, shape index: {}]
  %s4 = inlined_call_operand.vmem [shape: f32[1,32], index: 4, kind: input, shape index: {}]
  %s5 = inlined_call_operand.vmem [shape: f32[32,1], index: 5, kind: input, shape index: {}]
  %s6 = inlined_call_operand.<no memory space> [shape: f32[1,1], index: 6, kind: input, shape index: {}]
  %s7 = inlined_call_operand.hbm [shape: f32[1,128], index: 7, kind: output, shape index: {}]
  %s8 = sld [smem:[#allocation0]]
  $region42: #{tpu_custom_call.1} parent=0
    _
  %s10 = ssub.s32 1, %s8
  %s11 = scalar_select 0, %s10, %s8
  %v12 = vstv %s6
  %13 = vst [vmem:[#allocation2] sm:$0x1] %v12
  $region1: #{tpu_custom_call.1} parent=0
    #allocation3 [shape = 'u8[262144]{0}', space=vmem, size = 0x40000, scoped, tag = 'input window, operand 0, single buffered']
    #allocation4 [shape = 's32[1]{0}', space=sflag, size = 0x4, scoped, tag = 'scoped memory for tpu_custom_call.1']
    #allocation5 [shape = 's32[1]{0}', space=sflag, size = 0x4, scoped, tag = 'scoped memory for tpu_custom_call.1']
    #allocation6 [shape = 'u8[512]{0}', space=vmem, size = 0x400, scoped, tag = 'output window, operand 0, single buffered']
    %14 = vsyncpa [#allocation4], 0
    %15 = vsyncpa [#allocation5], 0
    // Predicated region
    $region2: #{tpu_custom_call.1} parent=1 // pred_check
      _
    $region3: #{tpu_custom_call.1} parent=1 // pred_check_branch
      %17 = sbr.rel (0) target = $region5
    $region4: #{tpu_custom_call.1} parent=1 // pred_region
      %19 = vsyncadd [#allocation4], 0
      %s20 = sshll.u32 %s0, 4
      %s21 = int_to_ptr.hbm [resolvable:$true] %s20
      %s22 = sshll.u32 [#allocation3], 4
      %s23 = int_to_ptr.vmem [resolvable:$true] %s22
      %28 = dma.hbm_to_vmem [thread:$0]  %s21, 8192, %s23, [#allocation4], 512, 512, 32
    $region5: #{tpu_custom_call.1} parent=1 // pred_fallthru
      _
    // Predicated region
    $region6: #{tpu_custom_call.1} parent=1 // pred_check
      _
    $region7: #{tpu_custom_call.1} parent=1 // pred_check_branch
      %30 = sbr.rel (0) target = $region9
    $region8: #{tpu_custom_call.1} parent=1 // pred_region
      _
    $region9: #{tpu_custom_call.1} parent=1 // pred_fallthru
      _
    // Predicated region
    $region10: #{tpu_custom_call.1} parent=1 // pred_check
      _
    $region11: #{tpu_custom_call.1} parent=1 // pred_check_branch
      %32 = sbr.rel (0) target = $region13
    $region12: #{tpu_custom_call.1} parent=1 // pred_region
      _
    $region13: #{tpu_custom_call.1} parent=1 // pred_fallthru
      _
    // Predicated region
    $region14: #{tpu_custom_call.1} parent=1 // pred_check
      _
    $region15: #{tpu_custom_call.1} parent=1 // pred_check_branch
      %34 = sbr.rel (0) target = $region17
    $region16: #{tpu_custom_call.1} parent=1 // pred_region
      _
    $region17: #{tpu_custom_call.1} parent=1 // pred_fallthru
      _
    // Predicated region
    $region18: #{tpu_custom_call.1} parent=1 // pred_check
      _
    $region19: #{tpu_custom_call.1} parent=1 // pred_check_branch
      %36 = sbr.rel (0) target = $region21
    $region20: #{tpu_custom_call.1} parent=1 // pred_region
      _
    $region21: #{tpu_custom_call.1} parent=1 // pred_fallthru
      _
    // Predicated region
    $region22: #{tpu_custom_call.1} parent=1 // pred_check
      _
    $region23: #{tpu_custom_call.1} parent=1 // pred_check_branch
      %38 = sbr.rel (0) target = $region25
    $region24: #{tpu_custom_call.1} parent=1 // pred_region
      _
    $region25: #{tpu_custom_call.1} parent=1 // pred_fallthru
      _
    // Predicated region
    $region26: #{tpu_custom_call.1} parent=1 // pred_check
      _
    $region27: #{tpu_custom_call.1} parent=1 // pred_check_branch
      %40 = sbr.rel (0) target = $region29
    $region28: #{tpu_custom_call.1} parent=1 // pred_region
      _
    $region29: #{tpu_custom_call.1} parent=1 // pred_fallthru
      _
    // Predicated region
    $region30: #{tpu_custom_call.1} parent=1 // pred_check
      _
    $region31: #{tpu_custom_call.1} parent=1 // pred_check_branch
      %42 = sbr.rel (0) target = $region33
    $region32: #{tpu_custom_call.1} parent=1 // pred_region
      %44 = dma.done [#allocation4], 8192
    $region33: #{tpu_custom_call.1} parent=1 // pred_fallthru
      _
    %v46 = vld [vmem:[#allocation3] sm:$0xff]
    %v47 = vld [vmem:[#allocation3 + $0x8] sm:$0xff]
    %v48 = vld [vmem:[#allocation3 + $0x10] sm:$0xff]
    %v49 = vld [vmem:[#allocation3 + $0x18] sm:$0xff]
    %v50 = vld [vmem:[#allocation3 + $0x20] sm:$0xff]
    %v51 = vld [vmem:[#allocation3 + $0x28] sm:$0xff]
    %v52 = vld [vmem:[#allocation3 + $0x30] sm:$0xff]
    %v53 = vld [vmem:[#allocation3 + $0x38] sm:$0xff]
    %v54 = vld [vmem:[#allocation3 + $0x40] sm:$0xff]
    %v55 = vld [vmem:[#allocation3 + $0x48] sm:$0xff]
    %v56 = vld [vmem:[#allocation3 + $0x50] sm:$0xff]
    %v57 = vld [vmem:[#allocation3 + $0x58] sm:$0xff]
    %v58 = vld [vmem:[#allocation3 + $0x60] sm:$0xff]
    %v59 = vld [vmem:[#allocation3 + $0x68] sm:$0xff]
    %v60 = vld [vmem:[#allocation3 + $0x70] sm:$0xff]
    %v61 = vld [vmem:[#allocation3 + $0x78] sm:$0xff]
    %v62 = vld [vmem:[#allocation3 + $0x80] sm:$0xff]
    %v63 = vld [vmem:[#allocation3 + $0x88] sm:$0xff]
    %v64 = vld [vmem:[#allocation3 + $0x90] sm:$0xff]
    %v65 = vld [vmem:[#allocation3 + $0x98] sm:$0xff]
    %v66 = vld [vmem:[#allocation3 + $0xa0] sm:$0xff]
    %v67 = vld [vmem:[#allocation3 + $0xa8] sm:$0xff]
    %v68 = vld [vmem:[#allocation3 + $0xb0] sm:$0xff]
    %v69 = vld [vmem:[#allocation3 + $0xb8] sm:$0xff]
    %v70 = vld [vmem:[#allocation3 + $0xc0] sm:$0xff]
    %v71 = vld [vmem:[#allocation3 + $0xc8] sm:$0xff]
    %v72 = vld [vmem:[#allocation3 + $0xd0] sm:$0xff]
    %v73 = vld [vmem:[#allocation3 + $0xd8] sm:$0xff]
    %v74 = vld [vmem:[#allocation3 + $0xe0] sm:$0xff]
    %v75 = vld [vmem:[#allocation3 + $0xe8] sm:$0xff]
    %v76 = vld [vmem:[#allocation3 + $0xf0] sm:$0xff]
    %v77 = vld [vmem:[#allocation3 + $0xf8] sm:$0xff]
    %v78 = vld [vmem:[#allocation3 + $0x100] sm:$0xff]
    %v79 = vld [vmem:[#allocation3 + $0x108] sm:$0xff]
    %v80 = vld [vmem:[#allocation3 + $0x110] sm:$0xff]
    %v81 = vld [vmem:[#allocation3 + $0x118] sm:$0xff]
    %v82 = vld [vmem:[#allocation3 + $0x120] sm:$0xff]
    %v83 = vld [vmem:[#allocation3 + $0x128] sm:$0xff]
    %v84 = vld [vmem:[#allocation3 + $0x130] sm:$0xff]
    %v85 = vld [vmem:[#allocation3 + $0x138] sm:$0xff]
    %v86 = vld [vmem:[#allocation3 + $0x140] sm:$0xff]
    %v87 = vld [vmem:[#allocation3 + $0x148] sm:$0xff]
    %v88 = vld [vmem:[#allocation3 + $0x150] sm:$0xff]
    %v89 = vld [vmem:[#allocation3 + $0x158] sm:$0xff]
    %v90 = vld [vmem:[#allocation3 + $0x160] sm:$0xff]
    %v91 = vld [vmem:[#allocation3 + $0x168] sm:$0xff]
    %v92 = vld [vmem:[#allocation3 + $0x170] sm:$0xff]
    %v93 = vld [vmem:[#allocation3 + $0x178] sm:$0xff]
    %v94 = vld [vmem:[#allocation3 + $0x180] sm:$0xff]
    %v95 = vld [vmem:[#allocation3 + $0x188] sm:$0xff]
    %v96 = vld [vmem:[#allocation3 + $0x190] sm:$0xff]
    %v97 = vld [vmem:[#allocation3 + $0x198] sm:$0xff]
    %v98 = vld [vmem:[#allocation3 + $0x1a0] sm:$0xff]
    %v99 = vld [vmem:[#allocation3 + $0x1a8] sm:$0xff]
    %v100 = vld [vmem:[#allocation3 + $0x1b0] sm:$0xff]
    %v101 = vld [vmem:[#allocation3 + $0x1b8] sm:$0xff]
    %v102 = vld [vmem:[#allocation3 + $0x1c0] sm:$0xff]
    %v103 = vld [vmem:[#allocation3 + $0x1c8] sm:$0xff]
    %v104 = vld [vmem:[#allocation3 + $0x1d0] sm:$0xff]
    %v105 = vld [vmem:[#allocation3 + $0x1d8] sm:$0xff]
    %v106 = vld [vmem:[#allocation3 + $0x1e0] sm:$0xff]
    %v107 = vld [vmem:[#allocation3 + $0x1e8] sm:$0xff]
    %v108 = vld [vmem:[#allocation3 + $0x1f0] sm:$0xff]
    %v109 = vld [vmem:[#allocation3 + $0x1f8] sm:$0xff]
    %v110 = vpack.c.bf16 %v50, %v46
    %v111 = vpack.c.bf16 %v51, %v47
    %v112 = vpack.c.bf16 %v52, %v48
    %v113 = vpack.c.bf16 %v53, %v49
    %v114 = vpack.c.bf16 %v58, %v54
    %v115 = vpack.c.bf16 %v59, %v55
    %v116 = vpack.c.bf16 %v60, %v56
    %v117 = vpack.c.bf16 %v61, %v57
    %v118 = vpack.c.bf16 %v66, %v62
    %v119 = vpack.c.bf16 %v67, %v63
    %v120 = vpack.c.bf16 %v68, %v64
    %v121 = vpack.c.bf16 %v69, %v65
    %v122 = vpack.c.bf16 %v74, %v70
    %v123 = vpack.c.bf16 %v75, %v71
    %v124 = vpack.c.bf16 %v76, %v72
    %v125 = vpack.c.bf16 %v77, %v73
    %v126 = vpack.c.bf16 %v82, %v78
    %v127 = vpack.c.bf16 %v83, %v79
    %v128 = vpack.c.bf16 %v84, %v80
    %v129 = vpack.c.bf16 %v85, %v81
    %v130 = vpack.c.bf16 %v90, %v86
    %v131 = vpack.c.bf16 %v91, %v87
    %v132 = vpack.c.bf16 %v92, %v88
    %v133 = vpack.c.bf16 %v93, %v89
    %v134 = vpack.c.bf16 %v98, %v94
    %v135 = vpack.c.bf16 %v99, %v95
    %v136 = vpack.c.bf16 %v100, %v96
    %v137 = vpack.c.bf16 %v101, %v97
    %v138 = vpack.c.bf16 %v106, %v102
    %v139 = vpack.c.bf16 %v107, %v103
    %v140 = vpack.c.bf16 %v108, %v104
    %v141 = vpack.c.bf16 %v109, %v105
    %v142 = vld [vmem:[%s1] sm:$0xf]
    %v143 = vld [vmem:[%s1 + $0x4] sm:$0xf]
    %v144 = vld [vmem:[%s1 + $0x8] sm:$0xf]
    %v145 = vld [vmem:[%s1 + $0xc] sm:$0xf]
    %v146 = vld [vmem:[%s1 + $0x10] sm:$0xf]
    %v147 = vld [vmem:[%s1 + $0x14] sm:$0xf]
    %v148 = vld [vmem:[%s1 + $0x18] sm:$0xf]
    %v149 = vld [vmem:[%s1 + $0x1c] sm:$0xf]
    %v150 = vld [vmem:[%s1 + $0x20] sm:$0xf]
    %v151 = vld [vmem:[%s1 + $0x24] sm:$0xf]
    %v152 = vld [vmem:[%s1 + $0x28] sm:$0xf]
    %v153 = vld [vmem:[%s1 + $0x2c] sm:$0xf]
    %v154 = vld [vmem:[%s1 + $0x30] sm:$0xf]
    %v155 = vld [vmem:[%s1 + $0x34] sm:$0xf]
    %v156 = vld [vmem:[%s1 + $0x38] sm:$0xf]
    %v157 = vld [vmem:[%s1 + $0x3c] sm:$0xf]
    %v158 = vld [vmem:[%s1 + $0x40] sm:$0xf]
    %v159 = vld [vmem:[%s1 + $0x44] sm:$0xf]
    %v160 = vld [vmem:[%s1 + $0x48] sm:$0xf]
    %v161 = vld [vmem:[%s1 + $0x4c] sm:$0xf]
    %v162 = vld [vmem:[%s1 + $0x50] sm:$0xf]
    %v163 = vld [vmem:[%s1 + $0x54] sm:$0xf]
    %v164 = vld [vmem:[%s1 + $0x58] sm:$0xf]
    %v165 = vld [vmem:[%s1 + $0x5c] sm:$0xf]
    %v166 = vld [vmem:[%s1 + $0x60] sm:$0xf]
    %v167 = vld [vmem:[%s1 + $0x64] sm:$0xf]
    %v168 = vld [vmem:[%s1 + $0x68] sm:$0xf]
    %v169 = vld [vmem:[%s1 + $0x6c] sm:$0xf]
    %v170 = vld [vmem:[%s1 + $0x70] sm:$0xf]
    %v171 = vld [vmem:[%s1 + $0x74] sm:$0xf]
    %v172 = vld [vmem:[%s1 + $0x78] sm:$0xf]
    %v173 = vld [vmem:[%s1 + $0x7c] sm:$0xf]
    %v174 = vld [vmem:[%s1 + $0x80] sm:$0xf]
    %v175 = vld [vmem:[%s1 + $0x84] sm:$0xf]
    %v176 = vld [vmem:[%s1 + $0x88] sm:$0xf]
    %v177 = vld [vmem:[%s1 + $0x8c] sm:$0xf]
    %v178 = vld [vmem:[%s1 + $0x90] sm:$0xf]
    %v179 = vld [vmem:[%s1 + $0x94] sm:$0xf]
    %v180 = vld [vmem:[%s1 + $0x98] sm:$0xf]
    %v181 = vld [vmem:[%s1 + $0x9c] sm:$0xf]
    %v182 = vld [vmem:[%s1 + $0xa0] sm:$0xf]
    %v183 = vld [vmem:[%s1 + $0xa4] sm:$0xf]
    %v184 = vld [vmem:[%s1 + $0xa8] sm:$0xf]
    %v185 = vld [vmem:[%s1 + $0xac] sm:$0xf]
    %v186 = vld [vmem:[%s1 + $0xb0] sm:$0xf]
    %v187 = vld [vmem:[%s1 + $0xb4] sm:$0xf]
    %v188 = vld [vmem:[%s1 + $0xb8] sm:$0xf]
    %v189 = vld [vmem:[%s1 + $0xbc] sm:$0xf]
    %v190 = vld [vmem:[%s1 + $0xc0] sm:$0xf]
    %v191 = vld [vmem:[%s1 + $0xc4] sm:$0xf]
    %v192 = vld [vmem:[%s1 + $0xc8] sm:$0xf]
    %v193 = vld [vmem:[%s1 + $0xcc] sm:$0xf]
    %v194 = vld [vmem:[%s1 + $0xd0] sm:$0xf]
    %v195 = vld [vmem:[%s1 + $0xd4] sm:$0xf]
    %v196 = vld [vmem:[%s1 + $0xd8] sm:$0xf]
    %v197 = vld [vmem:[%s1 + $0xdc] sm:$0xf]
    %v198 = vld [vmem:[%s1 + $0xe0] sm:$0xf]
    %v199 = vld [vmem:[%s1 + $0xe4] sm:$0xf]
    %v200 = vld [vmem:[%s1 + $0xe8] sm:$0xf]
    %v201 = vld [vmem:[%s1 + $0xec] sm:$0xf]
    %v202 = vld [vmem:[%s1 + $0xf0] sm:$0xf]
    %v203 = vld [vmem:[%s1 + $0xf4] sm:$0xf]
    %v204 = vld [vmem:[%s1 + $0xf8] sm:$0xf]
    %v205 = vld [vmem:[%s1 + $0xfc] sm:$0xf]
    %v206 = vld [vmem:[%s2] sm:$0x1]
    %v208 = vperm.slane %v206, 0
    %v274 = vunpack.c.l.b16 %v142
    %v275 = vunpack.c.l.b16 %v143
    %v276 = vunpack.c.l.b16 %v144
    %v277 = vunpack.c.l.b16 %v145
    %v278 = vunpack.c.l.b16 %v146
    %v279 = vunpack.c.l.b16 %v147
    %v280 = vunpack.c.l.b16 %v148
    %v281 = vunpack.c.l.b16 %v149
    %v282 = vunpack.c.l.b16 %v150
    %v283 = vunpack.c.l.b16 %v151
    %v284 = vunpack.c.l.b16 %v152
    %v285 = vunpack.c.l.b16 %v153
    %v286 = vunpack.c.l.b16 %v154
    %v287 = vunpack.c.l.b16 %v155
    %v288 = vunpack.c.l.b16 %v156
    %v289 = vunpack.c.l.b16 %v157
    %v290 = vunpack.c.l.b16 %v158
    %v291 = vunpack.c.l.b16 %v159
    %v292 = vunpack.c.l.b16 %v160
    %v293 = vunpack.c.l.b16 %v161
    %v294 = vunpack.c.l.b16 %v162
    %v295 = vunpack.c.l.b16 %v163
    %v296 = vunpack.c.l.b16 %v164
    %v297 = vunpack.c.l.b16 %v165
    %v298 = vunpack.c.l.b16 %v166
    %v299 = vunpack.c.l.b16 %v167
    %v300 = vunpack.c.l.b16 %v168
    %v301 = vunpack.c.l.b16 %v169
    %v302 = vunpack.c.l.b16 %v170
    %v303 = vunpack.c.l.b16 %v171
    %v304 = vunpack.c.l.b16 %v172
    %v305 = vunpack.c.l.b16 %v173
    %v306 = vunpack.c.l.b16 %v174
    %v307 = vunpack.c.l.b16 %v175
    %v308 = vunpack.c.l.b16 %v176
    %v309 = vunpack.c.l.b16 %v177
    %v310 = vunpack.c.l.b16 %v178
    %v311 = vunpack.c.l.b16 %v179
    %v312 = vunpack.c.l.b16 %v180
    %v313 = vunpack.c.l.b16 %v181
    %v314 = vunpack.c.l.b16 %v182
    %v315 = vunpack.c.l.b16 %v183
    %v316 = vunpack.c.l.b16 %v184
    %v317 = vunpack.c.l.b16 %v185
    %v318 = vunpack.c.l.b16 %v186
    %v319 = vunpack.c.l.b16 %v187
    %v320 = vunpack.c.l.b16 %v188
    %v321 = vunpack.c.l.b16 %v189
    %v322 = vunpack.c.l.b16 %v190
    %v323 = vunpack.c.l.b16 %v191
    %v324 = vunpack.c.l.b16 %v192
    %v325 = vunpack.c.l.b16 %v193
    %v326 = vunpack.c.l.b16 %v194
    %v327 = vunpack.c.l.b16 %v195
    %v328 = vunpack.c.l.b16 %v196
    %v329 = vunpack.c.l.b16 %v197
    %v330 = vunpack.c.l.b16 %v198
    %v331 = vunpack.c.l.b16 %v199
    %v332 = vunpack.c.l.b16 %v200
    %v333 = vunpack.c.l.b16 %v201
    %v334 = vunpack.c.l.b16 %v202
    %v335 = vunpack.c.l.b16 %v203
    %v336 = vunpack.c.l.b16 %v204
    %v337 = vunpack.c.l.b16 %v205
    %v338 = vpack.c.b16 %v275, %v274
    %v339 = vpack.c.b16 %v277, %v276
    %v340 = vpack.c.b16 %v279, %v278
    %v341 = vpack.c.b16 %v281, %v280
    %v342 = vpack.c.b16 %v283, %v282
    %v343 = vpack.c.b16 %v285, %v284
    %v344 = vpack.c.b16 %v287, %v286
    %v345 = vpack.c.b16 %v289, %v288
    %v346 = vpack.c.b16 %v291, %v290
    %v347 = vpack.c.b16 %v293, %v292
    %v348 = vpack.c.b16 %v295, %v294
    %v349 = vpack.c.b16 %v297, %v296
    %v350 = vpack.c.b16 %v299, %v298
    %v351 = vpack.c.b16 %v301, %v300
    %v352 = vpack.c.b16 %v303, %v302
    %v353 = vpack.c.b16 %v305, %v304
    %v354 = vpack.c.b16 %v307, %v306
    %v355 = vpack.c.b16 %v309, %v308
    %v356 = vpack.c.b16 %v311, %v310
    %v357 = vpack.c.b16 %v313, %v312
    %v358 = vpack.c.b16 %v315, %v314
    %v359 = vpack.c.b16 %v317, %v316
    %v360 = vpack.c.b16 %v319, %v318
    %v361 = vpack.c.b16 %v321, %v320
    %v362 = vpack.c.b16 %v323, %v322
    %v363 = vpack.c.b16 %v325, %v324
    %v364 = vpack.c.b16 %v327, %v326
    %v365 = vpack.c.b16 %v329, %v328
    %v366 = vpack.c.b16 %v331, %v330
    %v367 = vpack.c.b16 %v333, %v332
    %v368 = vpack.c.b16 %v335, %v334
    %v369 = vpack.c.b16 %v337, %v336
    %402 = vmatpush.bf16.msra.mxu0 %v345
    %403 = vmatpush.bf16.msra.mxu0 %v344
    %404 = vmatpush.bf16.msra.mxu0 %v343
    %405 = vmatpush.bf16.msra.mxu0 %v342
    %406 = vmatpush.bf16.msra.mxu0 %v341
    %407 = vmatpush.bf16.msra.mxu0 %v340
    %408 = vmatpush.bf16.msra.mxu0 %v339
    %409 = vmatpush.bf16.msra.mxu0 %v338
    %410 = vmatmul.bf16.gmra.mxu0 %v110
    %v411 = vpop.f32.mrf.mxu0
    %v412 = vadd.f32 %v208, %v411
    %v413 = vpop.f32.mrf.mxu0
    %v414 = vadd.f32 %v208, %v413
    %415 = vmatmul.bf16.gmra.mxu0 %v114
    %v416 = vpop.f32.mrf.mxu0
    %v417 = vadd.f32 %v208, %v416
    %v418 = vpop.f32.mrf.mxu0
    %v419 = vadd.f32 %v208, %v418
    %420 = vmatmul.bf16.gmra.mxu0 %v118
    %v421 = vpop.f32.mrf.mxu0
    %v422 = vadd.f32 %v208, %v421
    %v423 = vpop.f32.mrf.mxu0
    %v424 = vadd.f32 %v208, %v423
    %425 = vmatmul.bf16.gmra.mxu0 %v122
    %v426 = vpop.f32.mrf.mxu0
    %v427 = vadd.f32 %v208, %v426
    %v428 = vpop.f32.mrf.mxu0
    %v429 = vadd.f32 %v208, %v428
    %430 = vmatmul.bf16.gmra.mxu0 %v126
    %v431 = vpop.f32.mrf.mxu0
    %v432 = vadd.f32 %v208, %v431
    %v433 = vpop.f32.mrf.mxu0
    %v434 = vadd.f32 %v208, %v433
    %435 = vmatmul.bf16.gmra.mxu0 %v130
    %v436 = vpop.f32.mrf.mxu0
    %v437 = vadd.f32 %v208, %v436
    %v438 = vpop.f32.mrf.mxu0
    %v439 = vadd.f32 %v208, %v438
    %440 = vmatmul.bf16.gmra.mxu0 %v134
    %v441 = vpop.f32.mrf.mxu0
    %v442 = vadd.f32 %v208, %v441
    %v443 = vpop.f32.mrf.mxu0
    %v444 = vadd.f32 %v208, %v443
    %445 = vmatmul.bf16.gmra.mxu0 %v138
    %v446 = vpop.f32.mrf.mxu0
    %v447 = vadd.f32 %v208, %v446
    %v448 = vpop.f32.mrf.mxu0
    %v449 = vadd.f32 %v208, %v448
    %450 = vdwg.mxu0
    %451 = vmatpush.bf16.msra.mxu0 %v353
    %452 = vmatpush.bf16.msra.mxu0 %v352
    %453 = vmatpush.bf16.msra.mxu0 %v351
    %454 = vmatpush.bf16.msra.mxu0 %v350
    %455 = vmatpush.bf16.msra.mxu0 %v349
    %456 = vmatpush.bf16.msra.mxu0 %v348
    %457 = vmatpush.bf16.msra.mxu0 %v347
    %458 = vmatpush.bf16.msra.mxu0 %v346
    %459 = vmatmul.bf16.gmra.mxu0 %v111
    %v460 = vpop.f32.mrf.mxu0
    %v461 = vadd.f32 %v412, %v460
    %v462 = vpop.f32.mrf.mxu0
    %v463 = vadd.f32 %v414, %v462
    %464 = vmatmul.bf16.gmra.mxu0 %v115
    %v465 = vpop.f32.mrf.mxu0
    %v466 = vadd.f32 %v417, %v465
    %v467 = vpop.f32.mrf.mxu0
    %v468 = vadd.f32 %v419, %v467
    %469 = vmatmul.bf16.gmra.mxu0 %v119
    %v470 = vpop.f32.mrf.mxu0
    %v471 = vadd.f32 %v422, %v470
    %v472 = vpop.f32.mrf.mxu0
    %v473 = vadd.f32 %v424, %v472
    %474 = vmatmul.bf16.gmra.mxu0 %v123
    %v475 = vpop.f32.mrf.mxu0
    %v476 = vadd.f32 %v427, %v475
    %v477 = vpop.f32.mrf.mxu0
    %v478 = vadd.f32 %v429, %v477
    %479 = vmatmul.bf16.gmra.mxu0 %v127
    %v480 = vpop.f32.mrf.mxu0
    %v481 = vadd.f32 %v432, %v480
    %v482 = vpop.f32.mrf.mxu0
    %v483 = vadd.f32 %v434, %v482
    %484 = vmatmul.bf16.gmra.mxu0 %v131
    %v485 = vpop.f32.mrf.mxu0
    %v486 = vadd.f32 %v437, %v485
    %v487 = vpop.f32.mrf.mxu0
    %v488 = vadd.f32 %v439, %v487
    %489 = vmatmul.bf16.gmra.mxu0 %v135
    %v490 = vpop.f32.mrf.mxu0
    %v491 = vadd.f32 %v442, %v490
    %v492 = vpop.f32.mrf.mxu0
    %v493 = vadd.f32 %v444, %v492
    %494 = vmatmul.bf16.gmra.mxu0 %v139
    %v495 = vpop.f32.mrf.mxu0
    %v496 = vadd.f32 %v447, %v495
    %v497 = vpop.f32.mrf.mxu0
    %v498 = vadd.f32 %v449, %v497
    %499 = vdwg.mxu0
    %500 = vmatpush.bf16.msra.mxu0 %v361
    %501 = vmatpush.bf16.msra.mxu0 %v360
    %502 = vmatpush.bf16.msra.mxu0 %v359
    %503 = vmatpush.bf16.msra.mxu0 %v358
    %504 = vmatpush.bf16.msra.mxu0 %v357
    %505 = vmatpush.bf16.msra.mxu0 %v356
    %506 = vmatpush.bf16.msra.mxu0 %v355
    %507 = vmatpush.bf16.msra.mxu0 %v354
    %508 = vmatmul.bf16.gmra.mxu0 %v112
    %v509 = vpop.f32.mrf.mxu0
    %v510 = vadd.f32 %v461, %v509
    %v511 = vpop.f32.mrf.mxu0
    %v512 = vadd.f32 %v463, %v511
    %513 = vmatmul.bf16.gmra.mxu0 %v116
    %v514 = vpop.f32.mrf.mxu0
    %v515 = vadd.f32 %v466, %v514
    %v516 = vpop.f32.mrf.mxu0
    %v517 = vadd.f32 %v468, %v516
    %518 = vmatmul.bf16.gmra.mxu0 %v120
    %v519 = vpop.f32.mrf.mxu0
    %v520 = vadd.f32 %v471, %v519
    %v521 = vpop.f32.mrf.mxu0
    %v522 = vadd.f32 %v473, %v521
    %523 = vmatmul.bf16.gmra.mxu0 %v124
    %v524 = vpop.f32.mrf.mxu0
    %v525 = vadd.f32 %v476, %v524
    %v526 = vpop.f32.mrf.mxu0
    %v527 = vadd.f32 %v478, %v526
    %528 = vmatmul.bf16.gmra.mxu0 %v128
    %v529 = vpop.f32.mrf.mxu0
    %v530 = vadd.f32 %v481, %v529
    %v531 = vpop.f32.mrf.mxu0
    %v532 = vadd.f32 %v483, %v531
    %533 = vmatmul.bf16.gmra.mxu0 %v132
    %v534 = vpop.f32.mrf.mxu0
    %v535 = vadd.f32 %v486, %v534
    %v536 = vpop.f32.mrf.mxu0
    %v537 = vadd.f32 %v488, %v536
    %538 = vmatmul.bf16.gmra.mxu0 %v136
    %v539 = vpop.f32.mrf.mxu0
    %v540 = vadd.f32 %v491, %v539
    %v541 = vpop.f32.mrf.mxu0
    %v542 = vadd.f32 %v493, %v541
    %543 = vmatmul.bf16.gmra.mxu0 %v140
    %v544 = vpop.f32.mrf.mxu0
    %v545 = vadd.f32 %v496, %v544
    %v546 = vpop.f32.mrf.mxu0
    %v547 = vadd.f32 %v498, %v546
    %548 = vdwg.mxu0
    %549 = vmatpush.bf16.msra.mxu0 %v369
    %550 = vmatpush.bf16.msra.mxu0 %v368
    %551 = vmatpush.bf16.msra.mxu0 %v367
    %552 = vmatpush.bf16.msra.mxu0 %v366
    %553 = vmatpush.bf16.msra.mxu0 %v365
    %554 = vmatpush.bf16.msra.mxu0 %v364
    %555 = vmatpush.bf16.msra.mxu0 %v363
    %556 = vmatpush.bf16.msra.mxu0 %v362
    %557 = vmatmul.bf16.gmra.mxu0 %v113
    %v558 = vpop.f32.mrf.mxu0
    %v559 = vadd.f32 %v510, %v558
    %v560 = vpop.f32.mrf.mxu0
    %v561 = vadd.f32 %v512, %v560
    %562 = vmatmul.bf16.gmra.mxu0 %v117
    %v563 = vpop.f32.mrf.mxu0
    %v564 = vadd.f32 %v515, %v563
    %v565 = vpop.f32.mrf.mxu0
    %v566 = vadd.f32 %v517, %v565
    %567 = vmatmul.bf16.gmra.mxu0 %v121
    %v568 = vpop.f32.mrf.mxu0
    %v569 = vadd.f32 %v520, %v568
    %v570 = vpop.f32.mrf.mxu0
    %v571 = vadd.f32 %v522, %v570
    %572 = vmatmul.bf16.gmra.mxu0 %v125
    %v573 = vpop.f32.mrf.mxu0
    %v574 = vadd.f32 %v525, %v573
    %v575 = vpop.f32.mrf.mxu0
    %v576 = vadd.f32 %v527, %v575
    %577 = vmatmul.bf16.gmra.mxu0 %v129
    %v578 = vpop.f32.mrf.mxu0
    %v579 = vadd.f32 %v530, %v578
    %v580 = vpop.f32.mrf.mxu0
    %v581 = vadd.f32 %v532, %v580
    %582 = vmatmul.bf16.gmra.mxu0 %v133
    %v583 = vpop.f32.mrf.mxu0
    %v584 = vadd.f32 %v535, %v583
    %v585 = vpop.f32.mrf.mxu0
    %v586 = vadd.f32 %v537, %v585
    %587 = vmatmul.bf16.gmra.mxu0 %v137
    %v588 = vpop.f32.mrf.mxu0
    %v589 = vadd.f32 %v540, %v588
    %v590 = vpop.f32.mrf.mxu0
    %v591 = vadd.f32 %v542, %v590
    %592 = vmatmul.bf16.gmra.mxu0 %v141
    %v593 = vpop.f32.mrf.mxu0
    %v594 = vadd.f32 %v545, %v593
    %v595 = vpop.f32.mrf.mxu0
    %v596 = vadd.f32 %v547, %v595
    %597 = vdwg.mxu0
    %v598 = vmax.f32 %v559, 0.0
    %v599 = vmax.f32 %v561, 0.0
    %v600 = vmax.f32 %v564, 0.0
    %v601 = vmax.f32 %v566, 0.0
    %v602 = vmax.f32 %v569, 0.0
    %v603 = vmax.f32 %v571, 0.0
    %v604 = vmax.f32 %v574, 0.0
    %v605 = vmax.f32 %v576, 0.0
    %v606 = vmax.f32 %v579, 0.0
    %v607 = vmax.f32 %v581, 0.0
    %v608 = vmax.f32 %v584, 0.0
    %v609 = vmax.f32 %v586, 0.0
    %v610 = vmax.f32 %v589, 0.0
    %v611 = vmax.f32 %v591, 0.0
    %v612 = vmax.f32 %v594, 0.0
    %v613 = vmax.f32 %v596, 0.0
    %v614 = vpack.c.bf16 %v599, %v598
    %v615 = vpack.c.bf16 %v601, %v600
    %v616 = vpack.c.bf16 %v603, %v602
    %v617 = vpack.c.bf16 %v605, %v604
    %v618 = vpack.c.bf16 %v607, %v606
    %v619 = vpack.c.bf16 %v609, %v608
    %v620 = vpack.c.bf16 %v611, %v610
    %v621 = vpack.c.bf16 %v613, %v612
    %v622 = vld [vmem:[%s3] sm:$0xf]
    %v623 = vld [vmem:[%s3 + $0x4] sm:$0xf]
    %v624 = vld [vmem:[%s3 + $0x8] sm:$0xf]
    %v625 = vld [vmem:[%s3 + $0xc] sm:$0xf]
    %v626 = vld [vmem:[%s3 + $0x10] sm:$0xf]
    %v627 = vld [vmem:[%s3 + $0x14] sm:$0xf]
    %v628 = vld [vmem:[%s3 + $0x18] sm:$0xf]
    %v629 = vld [vmem:[%s3 + $0x1c] sm:$0xf]
    %v630 = vld [vmem:[%s4] sm:$0x1]
    %v632 = vperm.slane %v630, 0
    %v642 = vunpack.c.l.b16 %v622
    %v643 = vunpack.c.l.b16 %v623
    %v644 = vunpack.c.l.b16 %v624
    %v645 = vunpack.c.l.b16 %v625
    %v646 = vunpack.c.l.b16 %v626
    %v647 = vunpack.c.l.b16 %v627
    %v648 = vunpack.c.l.b16 %v628
    %v649 = vunpack.c.l.b16 %v629
    %v650 = vpack.c.b16 %v643, %v642
    %v651 = vpack.c.b16 %v645, %v644
    %v652 = vpack.c.b16 %v647, %v646
    %v653 = vpack.c.b16 %v649, %v648
    %vm658 = vcmask 523264
    %v660 = vsel %vm658, %v614, 0
    %v663 = vsel %vm658, %v615, 0
    %v666 = vsel %vm658, %v616, 0
    %v669 = vsel %vm658, %v617, 0
    %v672 = vsel %vm658, %v618, 0
    %v675 = vsel %vm658, %v619, 0
    %v678 = vsel %vm658, %v620, 0
    %v681 = vsel %vm658, %v621, 0
    %683 = vmatpush.bf16.msra.mxu0 0
    %684 = vmatpush.bf16.msra.mxu0 0
    %685 = vmatpush.bf16.msra.mxu0 0
    %686 = vmatpush.bf16.msra.mxu0 0
    %687 = vmatpush.bf16.msra.mxu0 %v653
    %688 = vmatpush.bf16.msra.mxu0 %v652
    %689 = vmatpush.bf16.msra.mxu0 %v651
    %690 = vmatpush.bf16.msra.mxu0 %v650
    %691 = vmatmul.bf16.gmra.mxu0 %v660
    %v692 = vpop.f32.mrf.mxu0
    %v693 = vadd.f32 %v632, %v692
    %v694 = vpop.f32.mrf.mxu0
    %v695 = vadd.f32 %v632, %v694
    %696 = vmatmul.bf16.gmra.mxu0 %v663
    %v697 = vpop.f32.mrf.mxu0
    %v698 = vadd.f32 %v632, %v697
    %v699 = vpop.f32.mrf.mxu0
    %v700 = vadd.f32 %v632, %v699
    %701 = vmatmul.bf16.gmra.mxu0 %v666
    %v702 = vpop.f32.mrf.mxu0
    %v703 = vadd.f32 %v632, %v702
    %v704 = vpop.f32.mrf.mxu0
    %v705 = vadd.f32 %v632, %v704
    %706 = vmatmul.bf16.gmra.mxu0 %v669
    %v707 = vpop.f32.mrf.mxu0
    %v708 = vadd.f32 %v632, %v707
    %v709 = vpop.f32.mrf.mxu0
    %v710 = vadd.f32 %v632, %v709
    %711 = vmatmul.bf16.gmra.mxu0 %v672
    %v712 = vpop.f32.mrf.mxu0
    %v713 = vadd.f32 %v632, %v712
    %v714 = vpop.f32.mrf.mxu0
    %v715 = vadd.f32 %v632, %v714
    %716 = vmatmul.bf16.gmra.mxu0 %v675
    %v717 = vpop.f32.mrf.mxu0
    %v718 = vadd.f32 %v632, %v717
    %v719 = vpop.f32.mrf.mxu0
    %v720 = vadd.f32 %v632, %v719
    %721 = vmatmul.bf16.gmra.mxu0 %v678
    %v722 = vpop.f32.mrf.mxu0
    %v723 = vadd.f32 %v632, %v722
    %v724 = vpop.f32.mrf.mxu0
    %v725 = vadd.f32 %v632, %v724
    %726 = vmatmul.bf16.gmra.mxu0 %v681
    %v727 = vpop.f32.mrf.mxu0
    %v728 = vadd.f32 %v632, %v727
    %v729 = vpop.f32.mrf.mxu0
    %v730 = vadd.f32 %v632, %v729
    %731 = vdwg.mxu0
    %v732 = vmax.f32 %v693, 0.0
    %v733 = vmax.f32 %v695, 0.0
    %v734 = vmax.f32 %v698, 0.0
    %v735 = vmax.f32 %v700, 0.0
    %v736 = vmax.f32 %v703, 0.0
    %v737 = vmax.f32 %v705, 0.0
    %v738 = vmax.f32 %v708, 0.0
    %v739 = vmax.f32 %v710, 0.0
    %v740 = vmax.f32 %v713, 0.0
    %v741 = vmax.f32 %v715, 0.0
    %v742 = vmax.f32 %v718, 0.0
    %v743 = vmax.f32 %v720, 0.0
    %v744 = vmax.f32 %v723, 0.0
    %v745 = vmax.f32 %v725, 0.0
    %v746 = vmax.f32 %v728, 0.0
    %v747 = vmax.f32 %v730, 0.0
    %748 = vxpose.xlu0.b32.start [1/16] %v732, 128
    %749 = vxpose.xlu0.b32.cont [2/16] %v733, 128
    %750 = vxpose.xlu0.b32.cont [3/16] %v734, 128
    %751 = vxpose.xlu0.b32.cont [4/16] %v735, 128
    %752 = vxpose.xlu0.b32.cont [5/16] %v736, 128
    %753 = vxpose.xlu0.b32.cont [6/16] %v737, 128
    %754 = vxpose.xlu0.b32.cont [7/16] %v738, 128
    %755 = vxpose.xlu0.b32.cont [8/16] %v739, 128
    %756 = vxpose.xlu0.b32.cont [9/16] %v740, 128
    %757 = vxpose.xlu0.b32.cont [10/16] %v741, 128
    %758 = vxpose.xlu0.b32.cont [11/16] %v742, 128
    %759 = vxpose.xlu0.b32.cont [12/16] %v743, 128
    %760 = vxpose.xlu0.b32.cont [13/16] %v744, 128
    %761 = vxpose.xlu0.b32.cont [14/16] %v745, 128
    %762 = vxpose.xlu0.b32.cont [15/16] %v746, 128
    %763 = vxpose.xlu0.b32.end [16/16] %v747, 128
    %v764 = vpop.trf.xlu0
    %v765 = vpop.trf.xlu0
    %v766 = vpop.trf.xlu0
    %v767 = vpop.trf.xlu0
    %v768 = vpop.trf.xlu0
    %v769 = vpop.trf.xlu0
    %v770 = vpop.trf.xlu0
    %v771 = vpop.trf.xlu0
    %v772 = vpop.trf.xlu0
    %v773 = vpop.trf.xlu0
    %v774 = vpop.trf.xlu0
    %v775 = vpop.trf.xlu0
    %v776 = vpop.trf.xlu0
    %v777 = vpop.trf.xlu0
    %v778 = vpop.trf.xlu0
    %v779 = vpop.trf.xlu0
    %v780 = vld [vmem:[%s5] sm:$0xff]
    %v781 = vld [vmem:[%s5 + $0x8] sm:$0xff]
    %v782 = vld [vmem:[%s5 + $0x10] sm:$0xff]
    %v783 = vld [vmem:[%s5 + $0x18] sm:$0xff]
    %785 = vset.pattern.permute.xlu0 0
    %786 = vperm.xlu0 %785, %v780
    %v787 = vpop.permute.xlu0 %786
    %790 = vset.pattern.permute.xlu0 0
    %791 = vperm.xlu0 %790, %v781
    %v792 = vpop.permute.xlu0 %791
    %795 = vset.pattern.permute.xlu0 0
    %796 = vperm.xlu0 %795, %v782
    %v797 = vpop.permute.xlu0 %796
    %800 = vset.pattern.permute.xlu0 0
    %801 = vperm.xlu0 %800, %v783
    %v802 = vpop.permute.xlu0 %801
    %v804 = vmul.f32 %v764, %v787
    %v805 = vmul.f32 %v765, %v792
    %v806 = vmul.f32 %v766, %v797
    %v807 = vmul.f32 %v767, %v802
    %v808 = vadd.f32 %v804, %v805
    %v809 = vadd.f32 %v808, %v806
    %v810 = vadd.f32 %v809, %v807
    %v811 = vrot.slane %v810, 4
    %v812 = vadd.f32 %v810, %v811
    %v813 = vrot.slane %v812, 2
    %v814 = vadd.f32 %v812, %v813
    %v815 = vrot.slane %v814, 1
    %v816 = vadd.f32 %v814, %v815
    %v817 = vld [vmem:[#allocation2] sm:$0x1]
    %819 = vset.pattern.permute.xlu0 0
    %820 = vperm.xlu0 %819, %v817
    %v821 = vpop.permute.xlu0 %820
    %v823 = vperm.slane %v821, 0
    %v824 = vadd.f32 %v816, %v823
    %825 = vst [vmem:[#allocation6] sm:$0x1] %v824
    // Predicated region
    $region34: #{tpu_custom_call.1} parent=1 // pred_check
      _
    $region35: #{tpu_custom_call.1} parent=1 // pred_check_branch
      %827 = sbr.rel (0) target = $region37
    $region36: #{tpu_custom_call.1} parent=1 // pred_region
      %829 = vsyncadd [#allocation5], 0
      %s831 = sshll.u32 [#allocation6], 4
      %s832 = int_to_ptr.vmem [resolvable:$true] %s831
      %s833 = sshll.u32 %s7, 4
      %s834 = int_to_ptr.hbm [resolvable:$true] %s833
      %836 = dma.vmem_to_hbm [thread:$0]  %s832, 16, %s834, [#allocation5]
    $region37: #{tpu_custom_call.1} parent=1 // pred_fallthru
      _
    // Predicated region
    $region38: #{tpu_custom_call.1} parent=1 // pred_check
      _
    $region39: #{tpu_custom_call.1} parent=1 // pred_check_branch
      %838 = sbr.rel (0) target = $region41
    $region40: #{tpu_custom_call.1} parent=1 // pred_region
      %840 = dma.done [#allocation5], 16
    $region41: #{tpu_custom_call.1} parent=1 // pred_fallthru
      _
    %841 = vsyncpa [#allocation4], 1
    %842 = vsyncpa [#allocation5], 1

</llo_original>
